<compile_context>
chip_gen: v6e
topology: v6e:2x2x1
jax: 0.10.0
libtpu: 0.0.40
codegen_flags: <defaults>
</compile_context>

<pallas_src>
import jax
import jax.numpy as jnp
from jax.experimental import pallas as pl
from jax.experimental.pallas import tpu as pltpu


def _round_up(x, m):
    return ((x + m - 1) // m) * m


def _pick_tile(m, max_tile=512):
    """M tile: as large as possible (<= max_tile), multiple of 8, grid length >= 2."""
    tm = min(max_tile, _round_up(m, 8))
    # Keep at least 2 grid steps so v7x megacore can split the token axis.
    if m > 8 and pl.cdiv(m, tm) < 2:
        tm = max(8, _round_up(pl.cdiv(m, 2), 8))
    return tm


def patch_embed_kernel(p_ref, w_ref, b_ref, o_ref):
    # p_ref: (tm, K) bf16 patch tile; w_ref: (K, E) bf16; b_ref: (1, E) f32.
    acc = jnp.dot(p_ref[...], w_ref[...], preferred_element_type=jnp.float32)
    o_ref[...] = (acc + b_ref[...]).astype(o_ref.dtype)


def patch_embed_forward(x, weight, bias, patch_size, out_dtype=None):
    """x: [B, C, H, W]; weight: [E, C, ph, pw]; bias: [E] -> [B, num_patches, E]."""
    B, C, H, W = x.shape
    E = weight.shape[0]
    ph, pw = patch_size
    assert H % ph == 0 and W % pw == 0, (H, W, patch_size)
    Hp, Wp = H // ph, W // pw
    num_patches = Hp * Wp
    M = B * num_patches
    K = C * ph * pw
    out_dtype = x.dtype if out_dtype is None else out_dtype

    # ---------- host-side layout plumbing (no compute) ----------
    # Cast to bf16 first so the materialized im2col intermediate is half the bytes.
    # Features ordered (c, kh, kw) to match the Conv2d weight layout (E, C, ph, pw).
    xb = x.astype(jnp.bfloat16)
    patches = xb.reshape(B, C, Hp, ph, Wp, pw).transpose(0, 2, 4, 1, 3, 5)
    patches = patches.reshape(M, K)

    tm = _pick_tile(M)
    n_steps = pl.cdiv(M, tm)
    M_pad = n_steps * tm
    if M_pad != M:  # pad the token axis up to a tile multiple (rows sliced off below)
        patches = jnp.pad(patches, ((0, M_pad - M), (0, 0)))

    # Pre-transposed bf16 weight (K, E): no in-kernel .T; grid-invariant -> fetched once.
    w_t = weight.reshape(E, K).T.astype(jnp.bfloat16)
    b2 = bias.reshape(1, E).astype(jnp.float32)

    out = pl.pallas_call(
        patch_embed_kernel,
        out_shape=jax.ShapeDtypeStruct((M_pad, E), out_dtype),
        grid=(n_steps,),
        in_specs=[
            pl.BlockSpec((tm, K), lambda i: (i, 0)),   # streamed token tile
            pl.BlockSpec((K, E), lambda i: (0, 0)),    # weight (grid-invariant)
            pl.BlockSpec((1, E), lambda i: (0, 0)),    # bias   (grid-invariant)
        ],
        out_specs=pl.BlockSpec((tm, E), lambda i: (i, 0)),
        compiler_params=pltpu.CompilerParams(
            dimension_semantics=("parallel",),
            # Allow XLA to fuse the im2col (cast/reshape/transpose) producer into the
            # pallas input instead of materializing a separate HBM buffer.
            allow_input_fusion=[True, False, False],
        ),
    )(patches, w_t, b2)

    if M_pad != M:
        out = out[:M]
    return out.reshape(B, num_patches, E)


def patch_embed_ref(x, weight, bias, patch_size):
    """Pure-JAX reference mirroring the PyTorch forward exactly (f32 conv)."""
    y = jax.lax.conv_general_dilated(
        x, weight, window_strides=tuple(patch_size), padding="VALID",
        dimension_numbers=("NCHW", "OIHW", "NCHW"))
    B, E, Hp, Wp = y.shape
    y = y + bias.reshape(1, E, 1, 1)
    return y.reshape(B, E, Hp * Wp).transpose(0, 2, 1)


if __name__ == "__main__":
    B, C = 2, 3
    img_size = (32, 128)
    patch_size = (4, 4)
    E = 256  # small embed_dim for the test; layout rules identical at 768

    key = jax.random.PRNGKey(0)
    kx, kw, kb = jax.random.split(key, 3)
    x = jax.random.normal(kx, (B, C, img_size[0], img_size[1]), jnp.float32)
    weight = 0.05 * jax.random.normal(
        kw, (E, C, patch_size[0], patch_size[1]), jnp.float32)
    bias = 0.05 * jax.random.normal(kb, (E,), jnp.float32)

    out = jax.block_until_ready(patch_embed_forward(x, weight, bias, patch_size))
    ref = jax.block_until_ready(patch_embed_ref(x, weight, bias, patch_size))

    num_patches = (img_size[0] // patch_size[0]) * (img_size[1] // patch_size[1])
    assert out.shape == (B, num_patches, E), out.shape
    # bf16 MXU operands + f32 accumulation -> bf16-level tolerance vs the f32 conv.
    max_err = float(jnp.max(jnp.abs(out - ref)))
    assert jnp.allclose(out, ref, atol=2e-2, rtol=2e-2), max_err
    print("KERNEL_OK")
</pallas_src>

<mosaic_0001>
module attributes {stable_mosaic.version = 11 : i64} {
  func.func @patch_embed_kernel(%arg0: i32, %arg1: memref<256x48xbf16, #tpu.memory_space<vmem>>, %arg2: memref<48x256xbf16, #tpu.memory_space<vmem>>, %arg3: memref<1x256xf32, #tpu.memory_space<vmem>>, %arg4: memref<256x256xf32, #tpu.memory_space<vmem>>) attributes {dimension_semantics = [#tpu.dimension_semantics<parallel>], iteration_bounds = array<i64: 2>, scalar_prefetch = 0 : i64, scratch_operands = 0 : i64, tpu.core_type = #tpu.core_type<tc>, window_params = [{transform_indices = @transform_0, window_bounds = array<i64: 256, 48>}, {pipeline_mode = #tpu.pipeline_mode<synchronous>, transform_indices = @transform_1, window_bounds = array<i64: 48, 256>}, {pipeline_mode = #tpu.pipeline_mode<synchronous>, transform_indices = @transform_2, window_bounds = array<i64: 1, 256>}, {transform_indices = @transform_3, window_bounds = array<i64: 256, 256>}]} {
    %c0 = arith.constant 0 : index
    %c0_0 = arith.constant 0 : index
    %0 = vector.load %arg1[%c0, %c0_0] : memref<256x48xbf16, #tpu.memory_space<vmem>>, vector<256x48xbf16>
    %c0_1 = arith.constant 0 : index
    %c0_2 = arith.constant 0 : index
    %1 = vector.load %arg2[%c0_1, %c0_2] : memref<48x256xbf16, #tpu.memory_space<vmem>>, vector<48x256xbf16>
    %cst = arith.constant dense<0.000000e+00> : vector<256x256xf32>
    %2 = tpu.matmul %0, %1, %cst {dimension_numbers = #tpu.dot_dimension_numbers<[1], [0], [0], [1], [0, 0, 1, 1], [], []>} : vector<256x48xbf16>, vector<48x256xbf16>, vector<256x256xf32> -> vector<256x256xf32>
    %c0_3 = arith.constant 0 : index
    %c0_4 = arith.constant 0 : index
    %3 = vector.load %arg3[%c0_3, %c0_4] : memref<1x256xf32, #tpu.memory_space<vmem>>, vector<1x256xf32>
    %4 = vector.broadcast %3 : vector<1x256xf32> to vector<256x256xf32>
    %5 = arith.addf %2, %4 : vector<256x256xf32>
    %c0_5 = arith.constant 0 : index
    %c0_6 = arith.constant 0 : index
    %6 = vector.load %arg4[%c0_5, %c0_6] : memref<256x256xf32, #tpu.memory_space<vmem>>, vector<256x256xf32>
    tpu.vector_store %arg4[%c0_5, %c0_6], %5 {strides = array<i32>} : memref<256x256xf32, #tpu.memory_space<vmem>>, vector<256x256xf32>,
    return
  }
  func.func @transform_0(%arg0: i32) -> (i32, i32) {
    %c0_i32 = arith.constant 0 : i32
    %c0_i32_0 = arith.constant 0 : i32
    return %arg0, %c0_i32 : i32, i32
  }
  func.func @transform_1(%arg0: i32) -> (i32, i32) {
    %c0_i32 = arith.constant 0 : i32
    %c0_i32_0 = arith.constant 0 : i32
    %c0_i32_1 = arith.constant 0 : i32
    return %c0_i32, %c0_i32_0 : i32, i32
  }
  func.func @transform_2(%arg0: i32) -> (i32, i32) {
    %c0_i32 = arith.constant 0 : i32
    %c0_i32_0 = arith.constant 0 : i32
    %c0_i32_1 = arith.constant 0 : i32
    return %c0_i32, %c0_i32_0 : i32, i32
  }
  func.func @transform_3(%arg0: i32) -> (i32, i32) {
    %c0_i32 = arith.constant 0 : i32
    %c0_i32_0 = arith.constant 0 : i32
    return %arg0, %c0_i32 : i32, i32
  }
}

</mosaic_0001>

<llo_original>
// kernel: tpu_custom_call.1
$region0: #{tpu_custom_call.1}
  #allocation0 [shape = 'u32[]', space=smem, size = 0x4, offset = 0x4, fixed_abs, tag = 'smem constant byte address 0x4 - core index']
  #allocation1 [shape = 'u32[144,128]{1,0:T(1,128)}', space=vmem, size = 0x12000, scoped, tag = 'internal scratch']
  %s0 = inlined_call_operand.vmem [shape: bf16[512,48], index: 0, kind: input, shape index: {}]
  %s1 = inlined_call_operand.vmem [shape: bf16[48,256], index: 1, kind: input, shape index: {}]
  %s2 = inlined_call_operand.vmem [shape: f32[1,256], index: 2, kind: input, shape index: {}]
  %s3 = inlined_call_operand.hbm [shape: f32[512,256], index: 3, kind: output, shape index: {}]
  %s4 = sld [smem:[#allocation0]]
  $region45: #{tpu_custom_call.1} parent=0
    _
  %s6 = ssub.s32 1, %s4
  %s7 = scalar_select 0, %s6, %s4
  $region1: #{tpu_custom_call.1} parent=0
    #allocation2 [shape = 'u8[524288]{0}', space=vmem, size = 0x80000, scoped, tag = 'output window, operand 0']
    #allocation3 [shape = 's32[2]{0}', space=sflag, size = 0x8, scoped, tag = 'scoped memory for tpu_custom_call.1']
    %8 = vsyncpa [#allocation3], 0
    %s9 = scalar_lea.sflag [#allocation3], 1
    %10 = vsyncpa %s9, 0
    loop: start=0, step=1, limit=4
    $region2: #{tpu_custom_call.1} parent=1 // loop_pre_header
      _
    $region3: #{tpu_custom_call.1} parent=1 // loop_header
      %s12 = sphi 0, %s16
      %p13 = scmp.ge.s32.totalorder %s12, 4
      %s22 = sphi 0, %s24
      %s25 = sphi 0, %s22
      %s26 = sphi 0, %s25
      %s42 = sphi 0, %s26
      %s46 = sphi 0, %s46
      %s48 = sphi 0, %s46
      %s49 = sphi 0, %s48
      %s63 = sphi 0, %s49
      %s67 = sphi 0, %s67
      %s69 = sphi 0, %s67
      %s70 = sphi 0, %s69
      %s84 = sphi 0, %s70
      %s90 = sphi 0, %s92
      %s93 = sphi 0, %s90
      %s94 = sphi 0, %s93
      %s110 = sphi 0, %s94
    $region4: #{tpu_custom_call.1} parent=1 // loop_header_branch
      %15 = sbr.rel (%p13) target = $region8
    $region5: #{tpu_custom_call.1} parent=1 // loop_body
      %s17 = ssub.s32 %s12, 1
      %s18 = ssub.s32 %s12, 2
      %s19 = sadd.s32 %s12, 1
      %s20 = ssub.s32 %s12, %s19
      %p21 = scmp.eq.s32.totalorder %s20, 0
      %s23 = sadd.s32 %s22, 1
      %s24 = scalar_select %p21, %s22, %s23
      %p27 = pneg %p21
      %p28 = scmp.eq.s32.totalorder %s12, 1
      %p29 = por %p27, %p28
      %p30 = scmp.ne.s32.totalorder %s22, %s25
      %p31 = scmp.eq.s32.totalorder %s12, 0
      %p32 = por %p30, %p31
      %p33 = scmp.ne.s32.totalorder %s22, %s25
      %p34 = scmp.eq.s32.totalorder %s17, 1
      %p35 = por %p33, %p34
      %p36 = scmp.ne.s32.totalorder %s25, %s26
      %p37 = scmp.eq.s32.totalorder %s17, 0
      %p38 = por %p36, %p37
      %p39 = scmp.ne.s32.totalorder %s25, %s26
      %p40 = scmp.eq.s32.totalorder %s18, 1
      %p41 = por %p39, %p40
      %p43 = scmp.ne.s32.totalorder %s26, %s42
      %p44 = scmp.eq.s32.totalorder %s18, 0
      %p45 = por %p43, %p44
      %s47 = sadd.s32 %s46, 1
      %p50 = scmp.eq.s32.totalorder %s12, 1
      %p51 = scmp.ne.s32.totalorder %s46, %s48
      %p52 = scmp.eq.s32.totalorder %s12, 0
      %p53 = por %p51, %p52
      %p54 = scmp.ne.s32.totalorder %s46, %s48
      %p55 = scmp.eq.s32.totalorder %s17, 1
      %p56 = por %p54, %p55
      %p57 = scmp.ne.s32.totalorder %s48, %s49
      %p58 = scmp.eq.s32.totalorder %s17, 0
      %p59 = por %p57, %p58
      %p60 = scmp.ne.s32.totalorder %s48, %s49
      %p61 = scmp.eq.s32.totalorder %s18, 1
      %p62 = por %p60, %p61
      %p64 = scmp.ne.s32.totalorder %s49, %s63
      %p65 = scmp.eq.s32.totalorder %s18, 0
      %p66 = por %p64, %p65
      %s68 = sadd.s32 %s67, 1
      %p71 = scmp.eq.s32.totalorder %s12, 1
      %p72 = scmp.ne.s32.totalorder %s67, %s69
      %p73 = scmp.eq.s32.totalorder %s12, 0
      %p74 = por %p72, %p73
      %p75 = scmp.ne.s32.totalorder %s67, %s69
      %p76 = scmp.eq.s32.totalorder %s17, 1
      %p77 = por %p75, %p76
      %p78 = scmp.ne.s32.totalorder %s69, %s70
      %p79 = scmp.eq.s32.totalorder %s17, 0
      %p80 = por %p78, %p79
      %p81 = scmp.ne.s32.totalorder %s69, %s70
      %p82 = scmp.eq.s32.totalorder %s18, 1
      %p83 = por %p81, %p82
      %p85 = scmp.ne.s32.totalorder %s70, %s84
      %p86 = scmp.eq.s32.totalorder %s18, 0
      %p87 = por %p85, %p86
      %s88 = ssub.s32 %s12, %s19
      %p89 = scmp.eq.s32.totalorder %s88, 0
      %s91 = sadd.s32 %s90, 1
      %s92 = scalar_select %p89, %s90, %s91
      %p95 = pneg %p89
      %p96 = scmp.eq.s32.totalorder %s12, 1
      %p97 = por %p95, %p96
      %p98 = scmp.ne.s32.totalorder %s90, %s93
      %p99 = scmp.eq.s32.totalorder %s12, 0
      %p100 = por %p98, %p99
      %p101 = scmp.ne.s32.totalorder %s90, %s93
      %p102 = scmp.eq.s32.totalorder %s17, 1
      %p103 = por %p101, %p102
      %p104 = scmp.ne.s32.totalorder %s93, %s94
      %p105 = scmp.eq.s32.totalorder %s17, 0
      %p106 = por %p104, %p105
      %p107 = scmp.ne.s32.totalorder %s93, %s94
      %p108 = scmp.eq.s32.totalorder %s18, 1
      %p109 = por %p107, %p108
      %p111 = scmp.ne.s32.totalorder %s94, %s110
      %p112 = scmp.eq.s32.totalorder %s18, 0
      %p113 = por %p111, %p112
      %p114 = scmp.le.s32.totalorder 1, %s12
      %p115 = scmp.lt.s32.totalorder %s12, 3
      %p116 = pnand %p114, %p115
      %p117 = pneg %p116
      // Predicated region
      $region9: #{tpu_custom_call.1} parent=5 // pred_check
        _
      $region10: #{tpu_custom_call.1} parent=5 // pred_check_branch
        %119 = sbr.rel (%p116) target = $region12
      $region11: #{tpu_custom_call.1} parent=5 // pred_region
        %s120 = ssub.s32 %s12, 1
        // Predicated region
        $region13: #{tpu_custom_call.1} parent=11 // pred_check
          %p121 = pneg %p59
        $region14: #{tpu_custom_call.1} parent=11 // pred_check_branch
          %123 = sbr.rel (%p121) target = $region16
        $region15: #{tpu_custom_call.1} parent=11 // pred_region
          _
        $region16: #{tpu_custom_call.1} parent=11 // pred_fallthru
          _
        // Predicated region
        $region17: #{tpu_custom_call.1} parent=11 // pred_check
          %p124 = pneg %p80
        $region18: #{tpu_custom_call.1} parent=11 // pred_check_branch
          %126 = sbr.rel (%p124) target = $region20
        $region19: #{tpu_custom_call.1} parent=11 // pred_region
          _
        $region20: #{tpu_custom_call.1} parent=11 // pred_fallthru
          _
      $region12: #{tpu_custom_call.1} parent=5 // pred_fallthru
        _
      %p127 = scmp.lt.s32.totalorder %s12, 2
      // Predicated region
      $region21: #{tpu_custom_call.1} parent=5 // pred_check
        %p128 = pneg %p127
      $region22: #{tpu_custom_call.1} parent=5 // pred_check_branch
        %130 = sbr.rel (%p128) target = $region24
      $region23: #{tpu_custom_call.1} parent=5 // pred_region
        // Predicated region
        $region25: #{tpu_custom_call.1} parent=23 // pred_check
          %p131 = pneg %p32
        $region26: #{tpu_custom_call.1} parent=23 // pred_check_branch
          %133 = sbr.rel (%p131) target = $region28
        $region27: #{tpu_custom_call.1} parent=23 // pred_region
          %s134 = smul.u32 32, %s12
          %p135 = scmp.lt.s32.totalorder %s134, 63
          %s136 = scalar_select %p135, %s134, 63
          %s137 = smul.addr %s136, 4
          %s138 = scalar_lea.vmem %s0, %s137
          %s139 = smul.u32 32, %s12
        $region28: #{tpu_custom_call.1} parent=23 // pred_fallthru
          _
      $region24: #{tpu_custom_call.1} parent=5 // pred_fallthru
        _
      %p140 = scmp.le.s32.totalorder 1, %s12
      %p141 = scmp.lt.s32.totalorder %s12, 3
      %p142 = pnand %p140, %p141
      %p143 = pneg %p142
      // Predicated region
      $region29: #{tpu_custom_call.1} parent=5 // pred_check
        _
      $region30: #{tpu_custom_call.1} parent=5 // pred_check_branch
        %145 = sbr.rel (%p142) target = $region32
      $region31: #{tpu_custom_call.1} parent=5 // pred_region
        %s146 = ssub.s32 %s12, 1
        %s147 = smul.u32 32, %s17
        %p148 = scmp.lt.s32.totalorder %s147, 63
        %s149 = scalar_select %p148, %s147, 63
        %s150 = smul.addr %s149, 4
        %s151 = scalar_lea.vmem %s0, %s150
        %p152 = pneg %p38
        %p153 = pneg %p35
        %p154 = pneg %p59
        %p155 = pneg %p56
        %p156 = pneg %p80
        %p157 = pneg %p77
        %p158 = pneg %p106
        %p159 = pneg %p103
        %s160 = sand.u32 %s93, 1
        %s161 = scalar_lea.sflag [#allocation3], %s160
        %s162 = sand.u32 %s93, 1
        %s163 = smul.addr %s162, 512
        %s164 = scalar_lea.vmem [#allocation2], %s163
        %s165 = smul.u32 32, %s17
        %p166 = scmp.lt.s32.totalorder %s165, 63
        %s167 = scalar_select %p166, %s165, 63
        %s168 = smul.addr %s167, 4
        %s169 = scalar_lea.vmem %s0, %s168
        %s170 = smul.u32 32, %s17
        %s171 = smul.u32 32, %s17
        %v173 = vld [vmem:[%s169] sm:$0xf]
        %v174 = vld [vmem:[%s169 + $0x4] sm:$0xf]
        %v175 = vld [vmem:[%s169 + $0x8] sm:$0xf]
        %v176 = vld [vmem:[%s169 + $0xc] sm:$0xf]
        %v177 = vld [vmem:[%s169 + $0x10] sm:$0xf]
        %v178 = vld [vmem:[%s169 + $0x14] sm:$0xf]
        %v179 = vld [vmem:[%s169 + $0x18] sm:$0xf]
        %v180 = vld [vmem:[%s169 + $0x1c] sm:$0xf]
        %v181 = vld [vmem:[%s169 + $0x20] sm:$0xf]
        %v182 = vld [vmem:[%s169 + $0x24] sm:$0xf]
        %v183 = vld [vmem:[%s169 + $0x28] sm:$0xf]
        %v184 = vld [vmem:[%s169 + $0x2c] sm:$0xf]
        %v185 = vld [vmem:[%s169 + $0x30] sm:$0xf]
        %v186 = vld [vmem:[%s169 + $0x34] sm:$0xf]
        %v187 = vld [vmem:[%s169 + $0x38] sm:$0xf]
        %v188 = vld [vmem:[%s169 + $0x3c] sm:$0xf]
        %v189 = vld [vmem:[%s169 + $0x40] sm:$0xf]
        %v190 = vld [vmem:[%s169 + $0x44] sm:$0xf]
        %v191 = vld [vmem:[%s169 + $0x48] sm:$0xf]
        %v192 = vld [vmem:[%s169 + $0x4c] sm:$0xf]
        %v193 = vld [vmem:[%s169 + $0x50] sm:$0xf]
        %v194 = vld [vmem:[%s169 + $0x54] sm:$0xf]
        %v195 = vld [vmem:[%s169 + $0x58] sm:$0xf]
        %v196 = vld [vmem:[%s169 + $0x5c] sm:$0xf]
        %v197 = vld [vmem:[%s169 + $0x60] sm:$0xf]
        %v198 = vld [vmem:[%s169 + $0x64] sm:$0xf]
        %v199 = vld [vmem:[%s169 + $0x68] sm:$0xf]
        %v200 = vld [vmem:[%s169 + $0x6c] sm:$0xf]
        %v201 = vld [vmem:[%s169 + $0x70] sm:$0xf]
        %v202 = vld [vmem:[%s169 + $0x74] sm:$0xf]
        %v203 = vld [vmem:[%s169 + $0x78] sm:$0xf]
        %v204 = vld [vmem:[%s169 + $0x7c] sm:$0xf]
        %v205 = vld [vmem:[%s1] sm:$0xff]
        %v206 = vld [vmem:[%s1 + $0x8] sm:$0xff]
        %v207 = vld [vmem:[%s1 + $0x10] sm:$0xff]
        %v208 = vld [vmem:[%s1 + $0x18] sm:$0xff]
        %v209 = vld [vmem:[%s1 + $0x20] sm:$0xff]
        %v210 = vld [vmem:[%s1 + $0x28] sm:$0xff]
        %v211 = vld [vmem:[%s2] sm:$0x3]
        %v213 = vlaneseq
        %v214 = vshrl.u32 %v213, 7
        %v215 = vsub.s32 0, %v214
        %v216 = vrot.slane %v211, %v215
        %v217 = vlaneseq
        %v218 = vshrl.u32 %v217, 7
        %v219 = vsub.s32 1, %v218
        %v220 = vrot.slane %v211, %v219
        %v255 = vunpack.c.l.b16 %v173
        %v256 = vunpack.c.l.b16 %v174
        %v257 = vunpack.c.l.b16 %v175
        %v258 = vunpack.c.l.b16 %v176
        %v259 = vunpack.c.l.b16 %v177
        %v260 = vunpack.c.l.b16 %v178
        %v261 = vunpack.c.l.b16 %v179
        %v262 = vunpack.c.l.b16 %v180
        %v263 = vunpack.c.l.b16 %v181
        %v264 = vunpack.c.l.b16 %v182
        %v265 = vunpack.c.l.b16 %v183
        %v266 = vunpack.c.l.b16 %v184
        %v267 = vunpack.c.l.b16 %v185
        %v268 = vunpack.c.l.b16 %v186
        %v269 = vunpack.c.l.b16 %v187
        %v270 = vunpack.c.l.b16 %v188
        %v271 = vunpack.c.l.b16 %v189
        %v272 = vunpack.c.l.b16 %v190
        %v273 = vunpack.c.l.b16 %v191
        %v274 = vunpack.c.l.b16 %v192
        %v275 = vunpack.c.l.b16 %v193
        %v276 = vunpack.c.l.b16 %v194
        %v277 = vunpack.c.l.b16 %v195
        %v278 = vunpack.c.l.b16 %v196
        %v279 = vunpack.c.l.b16 %v197
        %v280 = vunpack.c.l.b16 %v198
        %v281 = vunpack.c.l.b16 %v199
        %v282 = vunpack.c.l.b16 %v200
        %v283 = vunpack.c.l.b16 %v201
        %v284 = vunpack.c.l.b16 %v202
        %v285 = vunpack.c.l.b16 %v203
        %v286 = vunpack.c.l.b16 %v204
        %v287 = vpack.c.b16 %v256, %v255
        %v288 = vpack.c.b16 %v258, %v257
        %v289 = vpack.c.b16 %v260, %v259
        %v290 = vpack.c.b16 %v262, %v261
        %v291 = vpack.c.b16 %v264, %v263
        %v292 = vpack.c.b16 %v266, %v265
        %v293 = vpack.c.b16 %v268, %v267
        %v294 = vpack.c.b16 %v270, %v269
        %v295 = vpack.c.b16 %v272, %v271
        %v296 = vpack.c.b16 %v274, %v273
        %v297 = vpack.c.b16 %v276, %v275
        %v298 = vpack.c.b16 %v278, %v277
        %v299 = vpack.c.b16 %v280, %v279
        %v300 = vpack.c.b16 %v282, %v281
        %v301 = vpack.c.b16 %v284, %v283
        %v302 = vpack.c.b16 %v286, %v285
        %v309 = vunpack.c.l.b16 %v205
        %v310 = vunpack.c.h.b16 %v205
        %v311 = vunpack.c.l.b16 %v206
        %v312 = vunpack.c.h.b16 %v206
        %v313 = vunpack.c.l.b16 %v207
        %v314 = vunpack.c.h.b16 %v207
        %v315 = vunpack.c.l.b16 %v208
        %v316 = vunpack.c.h.b16 %v208
        %v317 = vunpack.c.l.b16 %v209
        %v318 = vunpack.c.h.b16 %v209
        %v319 = vunpack.c.l.b16 %v210
        %v320 = vunpack.c.h.b16 %v210
        %v321 = vpack.c.b16 %v311, %v309
        %v322 = vpack.c.b16 %v312, %v310
        %v323 = vpack.c.b16 %v315, %v313
        %v324 = vpack.c.b16 %v316, %v314
        %v325 = vpack.c.b16 %v319, %v317
        %v326 = vpack.c.b16 %v320, %v318
        %vm333 = vcmask 392192
        %v335 = vsel %vm333, %v287, 0
        %v338 = vsel %vm333, %v288, 0
        %v341 = vsel %vm333, %v289, 0
        %v344 = vsel %vm333, %v290, 0
        %v347 = vsel %vm333, %v291, 0
        %v350 = vsel %vm333, %v292, 0
        %v353 = vsel %vm333, %v293, 0
        %v356 = vsel %vm333, %v294, 0
        %v359 = vsel %vm333, %v295, 0
        %v362 = vsel %vm333, %v296, 0
        %v365 = vsel %vm333, %v297, 0
        %v368 = vsel %vm333, %v298, 0
        %v371 = vsel %vm333, %v299, 0
        %v374 = vsel %vm333, %v300, 0
        %v377 = vsel %vm333, %v301, 0
        %v380 = vsel %vm333, %v302, 0
        %382 = vmatprep.subr.bf16.mxu0 0
        %383 = vmatpush1.bf16.msra.mxu0 0
        %384 = vmatprep.subr.bf16.mxu0 0
        %385 = vmatpush1.bf16.msra.mxu0 0
        %386 = vmatprep.subr.bf16.mxu0 0
        %387 = vmatpush1.bf16.msra.mxu0 0
        %388 = vmatprep.subr.bf16.mxu0 0
        %389 = vmatpush1.bf16.msra.mxu0 0
        %390 = vmatprep.subr.bf16.mxu0 0
        %391 = vmatpush1.bf16.msra.mxu0 0
        %392 = vmatprep.subr.bf16.mxu0 %v326
        %393 = vmatpush1.bf16.msra.mxu0 %v325
        %394 = vmatprep.subr.bf16.mxu0 %v324
        %395 = vmatpush1.bf16.msra.mxu0 %v323
        %396 = vmatprep.subr.bf16.mxu0 %v322
        %397 = vmatpush1.bf16.msra.mxu0 %v321
        %398 = vmatprep.subr.bf16.mxu0 0
        %399 = vmatpush2.bf16.msra.mxu0 0
        %400 = vmatprep.subr.bf16.mxu0 0
        %401 = vmatpush2.bf16.msra.mxu0 0
        %402 = vmatprep.subr.bf16.mxu0 0
        %403 = vmatpush2.bf16.msra.mxu0 0
        %404 = vmatprep.subr.bf16.mxu0 0
        %405 = vmatpush2.bf16.msra.mxu0 0
        %406 = vmatprep.subr.bf16.mxu0 0
        %407 = vmatpush2.bf16.msra.mxu0 0
        %408 = vmatprep.subr.bf16.mxu0 0
        %409 = vmatpush2.bf16.msra.mxu0 0
        %410 = vmatprep.subr.bf16.mxu0 0
        %411 = vmatpush2.bf16.msra.mxu0 0
        %412 = vmatprep.subr.bf16.mxu0 0
        %413 = vmatpush2.bf16.msra.mxu0 0
        %414 = vmatprep.mubr.bf16.mxu0 0
        %415 = vmatmul.mubr.bf16.gmra.mxu0 %v335
        %v416 = vpop.f32.mrf.mxu0
        %v417 = vadd.f32 %v216, %v416
        %v418 = vpop.f32.mrf.mxu0
        %v419 = vadd.f32 %v220, %v418
        %v420 = vpop.f32.mrf.mxu0
        %v421 = vadd.f32 %v216, %v420
        %v422 = vpop.f32.mrf.mxu0
        %v423 = vadd.f32 %v220, %v422
        %424 = vmatprep.mubr.bf16.mxu0 0
        %425 = vmatmul.mubr.bf16.gmra.mxu0 %v338
        %v426 = vpop.f32.mrf.mxu0
        %v427 = vadd.f32 %v216, %v426
        %v428 = vpop.f32.mrf.mxu0
        %v429 = vadd.f32 %v220, %v428
        %v430 = vpop.f32.mrf.mxu0
        %v431 = vadd.f32 %v216, %v430
        %v432 = vpop.f32.mrf.mxu0
        %v433 = vadd.f32 %v220, %v432
        %434 = vmatprep.mubr.bf16.mxu0 0
        %435 = vmatmul.mubr.bf16.gmra.mxu0 %v341
        %v436 = vpop.f32.mrf.mxu0
        %v437 = vadd.f32 %v216, %v436
        %v438 = vpop.f32.mrf.mxu0
        %v439 = vadd.f32 %v220, %v438
        %v440 = vpop.f32.mrf.mxu0
        %v441 = vadd.f32 %v216, %v440
        %v442 = vpop.f32.mrf.mxu0
        %v443 = vadd.f32 %v220, %v442
        %444 = vmatprep.mubr.bf16.mxu0 0
        %445 = vmatmul.mubr.bf16.gmra.mxu0 %v344
        %v446 = vpop.f32.mrf.mxu0
        %v447 = vadd.f32 %v216, %v446
        %v448 = vpop.f32.mrf.mxu0
        %v449 = vadd.f32 %v220, %v448
        %v450 = vpop.f32.mrf.mxu0
        %v451 = vadd.f32 %v216, %v450
        %v452 = vpop.f32.mrf.mxu0
        %v453 = vadd.f32 %v220, %v452
        %454 = vmatprep.mubr.bf16.mxu0 0
        %455 = vmatmul.mubr.bf16.gmra.mxu0 %v347
        %v456 = vpop.f32.mrf.mxu0
        %v457 = vadd.f32 %v216, %v456
        %v458 = vpop.f32.mrf.mxu0
        %v459 = vadd.f32 %v220, %v458
        %v460 = vpop.f32.mrf.mxu0
        %v461 = vadd.f32 %v216, %v460
        %v462 = vpop.f32.mrf.mxu0
        %v463 = vadd.f32 %v220, %v462
        %464 = vmatprep.mubr.bf16.mxu0 0
        %465 = vmatmul.mubr.bf16.gmra.mxu0 %v350
        %v466 = vpop.f32.mrf.mxu0
        %v467 = vadd.f32 %v216, %v466
        %v468 = vpop.f32.mrf.mxu0
        %v469 = vadd.f32 %v220, %v468
        %v470 = vpop.f32.mrf.mxu0
        %v471 = vadd.f32 %v216, %v470
        %v472 = vpop.f32.mrf.mxu0
        %v473 = vadd.f32 %v220, %v472
        %474 = vmatprep.mubr.bf16.mxu0 0
        %475 = vmatmul.mubr.bf16.gmra.mxu0 %v353
        %v476 = vpop.f32.mrf.mxu0
        %v477 = vadd.f32 %v216, %v476
        %v478 = vpop.f32.mrf.mxu0
        %v479 = vadd.f32 %v220, %v478
        %v480 = vpop.f32.mrf.mxu0
        %v481 = vadd.f32 %v216, %v480
        %v482 = vpop.f32.mrf.mxu0
        %v483 = vadd.f32 %v220, %v482
        %484 = vmatprep.mubr.bf16.mxu0 0
        %485 = vmatmul.mubr.bf16.gmra.mxu0 %v356
        %v486 = vpop.f32.mrf.mxu0
        %v487 = vadd.f32 %v216, %v486
        %v488 = vpop.f32.mrf.mxu0
        %v489 = vadd.f32 %v220, %v488
        %v490 = vpop.f32.mrf.mxu0
        %v491 = vadd.f32 %v216, %v490
        %v492 = vpop.f32.mrf.mxu0
        %v493 = vadd.f32 %v220, %v492
        %494 = vmatprep.mubr.bf16.mxu0 0
        %495 = vmatmul.mubr.bf16.gmra.mxu0 %v359
        %v496 = vpop.f32.mrf.mxu0
        %v497 = vadd.f32 %v216, %v496
        %v498 = vpop.f32.mrf.mxu0
        %v499 = vadd.f32 %v220, %v498
        %v500 = vpop.f32.mrf.mxu0
        %v501 = vadd.f32 %v216, %v500
        %v502 = vpop.f32.mrf.mxu0
        %v503 = vadd.f32 %v220, %v502
        %504 = vmatprep.mubr.bf16.mxu0 0
        %505 = vmatmul.mubr.bf16.gmra.mxu0 %v362
        %v506 = vpop.f32.mrf.mxu0
        %v507 = vadd.f32 %v216, %v506
        %v508 = vpop.f32.mrf.mxu0
        %v509 = vadd.f32 %v220, %v508
        %v510 = vpop.f32.mrf.mxu0
        %v511 = vadd.f32 %v216, %v510
        %v512 = vpop.f32.mrf.mxu0
        %v513 = vadd.f32 %v220, %v512
        %514 = vmatprep.mubr.bf16.mxu0 0
        %515 = vmatmul.mubr.bf16.gmra.mxu0 %v365
        %v516 = vpop.f32.mrf.mxu0
        %v517 = vadd.f32 %v216, %v516
        %v518 = vpop.f32.mrf.mxu0
        %v519 = vadd.f32 %v220, %v518
        %v520 = vpop.f32.mrf.mxu0
        %v521 = vadd.f32 %v216, %v520
        %v522 = vpop.f32.mrf.mxu0
        %v523 = vadd.f32 %v220, %v522
        %524 = vmatprep.mubr.bf16.mxu0 0
        %525 = vmatmul.mubr.bf16.gmra.mxu0 %v368
        %v526 = vpop.f32.mrf.mxu0
        %v527 = vadd.f32 %v216, %v526
        %v528 = vpop.f32.mrf.mxu0
        %v529 = vadd.f32 %v220, %v528
        %v530 = vpop.f32.mrf.mxu0
        %v531 = vadd.f32 %v216, %v530
        %v532 = vpop.f32.mrf.mxu0
        %v533 = vadd.f32 %v220, %v532
        %534 = vmatprep.mubr.bf16.mxu0 0
        %535 = vmatmul.mubr.bf16.gmra.mxu0 %v371
        %v536 = vpop.f32.mrf.mxu0
        %v537 = vadd.f32 %v216, %v536
        %v538 = vpop.f32.mrf.mxu0
        %v539 = vadd.f32 %v220, %v538
        %v540 = vpop.f32.mrf.mxu0
        %v541 = vadd.f32 %v216, %v540
        %v542 = vpop.f32.mrf.mxu0
        %v543 = vadd.f32 %v220, %v542
        %544 = vmatprep.mubr.bf16.mxu0 0
        %545 = vmatmul.mubr.bf16.gmra.mxu0 %v374
        %v546 = vpop.f32.mrf.mxu0
        %v547 = vadd.f32 %v216, %v546
        %v548 = vpop.f32.mrf.mxu0
        %v549 = vadd.f32 %v220, %v548
        %v550 = vpop.f32.mrf.mxu0
        %v551 = vadd.f32 %v216, %v550
        %v552 = vpop.f32.mrf.mxu0
        %v553 = vadd.f32 %v220, %v552
        %554 = vmatprep.mubr.bf16.mxu0 0
        %555 = vmatmul.mubr.bf16.gmra.mxu0 %v377
        %v556 = vpop.f32.mrf.mxu0
        %v557 = vadd.f32 %v216, %v556
        %v558 = vpop.f32.mrf.mxu0
        %v559 = vadd.f32 %v220, %v558
        %v560 = vpop.f32.mrf.mxu0
        %v561 = vadd.f32 %v216, %v560
        %v562 = vpop.f32.mrf.mxu0
        %v563 = vadd.f32 %v220, %v562
        %564 = vmatprep.mubr.bf16.mxu0 0
        %565 = vmatmul.mubr.bf16.gmra.mxu0 %v380
        %v566 = vpop.f32.mrf.mxu0
        %v567 = vadd.f32 %v216, %v566
        %v568 = vpop.f32.mrf.mxu0
        %v569 = vadd.f32 %v220, %v568
        %v570 = vpop.f32.mrf.mxu0
        %v571 = vadd.f32 %v216, %v570
        %v572 = vpop.f32.mrf.mxu0
        %v573 = vadd.f32 %v220, %v572
        %574 = vdwg.mxu0
        %575 = vst [vmem:[%s164] sm:$0xff] %v417
        %576 = vst [vmem:[%s164 + $0x8] sm:$0xff] %v419
        %577 = vst [vmem:[%s164 + $0x10] sm:$0xff] %v421
        %578 = vst [vmem:[%s164 + $0x18] sm:$0xff] %v423
        %579 = vst [vmem:[%s164 + $0x20] sm:$0xff] %v427
        %580 = vst [vmem:[%s164 + $0x28] sm:$0xff] %v429
        %581 = vst [vmem:[%s164 + $0x30] sm:$0xff] %v431
        %582 = vst [vmem:[%s164 + $0x38] sm:$0xff] %v433
        %583 = vst [vmem:[%s164 + $0x40] sm:$0xff] %v437
        %584 = vst [vmem:[%s164 + $0x48] sm:$0xff] %v439
        %585 = vst [vmem:[%s164 + $0x50] sm:$0xff] %v441
        %586 = vst [vmem:[%s164 + $0x58] sm:$0xff] %v443
        %587 = vst [vmem:[%s164 + $0x60] sm:$0xff] %v447
        %588 = vst [vmem:[%s164 + $0x68] sm:$0xff] %v449
        %589 = vst [vmem:[%s164 + $0x70] sm:$0xff] %v451
        %590 = vst [vmem:[%s164 + $0x78] sm:$0xff] %v453
        %591 = vst [vmem:[%s164 + $0x80] sm:$0xff] %v457
        %592 = vst [vmem:[%s164 + $0x88] sm:$0xff] %v459
        %593 = vst [vmem:[%s164 + $0x90] sm:$0xff] %v461
        %594 = vst [vmem:[%s164 + $0x98] sm:$0xff] %v463
        %595 = vst [vmem:[%s164 + $0xa0] sm:$0xff] %v467
        %596 = vst [vmem:[%s164 + $0xa8] sm:$0xff] %v469
        %597 = vst [vmem:[%s164 + $0xb0] sm:$0xff] %v471
        %598 = vst [vmem:[%s164 + $0xb8] sm:$0xff] %v473
        %599 = vst [vmem:[%s164 + $0xc0] sm:$0xff] %v477
        %600 = vst [vmem:[%s164 + $0xc8] sm:$0xff] %v479
        %601 = vst [vmem:[%s164 + $0xd0] sm:$0xff] %v481
        %602 = vst [vmem:[%s164 + $0xd8] sm:$0xff] %v483
        %603 = vst [vmem:[%s164 + $0xe0] sm:$0xff] %v487
        %604 = vst [vmem:[%s164 + $0xe8] sm:$0xff] %v489
        %605 = vst [vmem:[%s164 + $0xf0] sm:$0xff] %v491
        %606 = vst [vmem:[%s164 + $0xf8] sm:$0xff] %v493
        %607 = vst [vmem:[%s164 + $0x100] sm:$0xff] %v497
        %608 = vst [vmem:[%s164 + $0x108] sm:$0xff] %v499
        %609 = vst [vmem:[%s164 + $0x110] sm:$0xff] %v501
        %610 = vst [vmem:[%s164 + $0x118] sm:$0xff] %v503
        %611 = vst [vmem:[%s164 + $0x120] sm:$0xff] %v507
        %612 = vst [vmem:[%s164 + $0x128] sm:$0xff] %v509
        %613 = vst [vmem:[%s164 + $0x130] sm:$0xff] %v511
        %614 = vst [vmem:[%s164 + $0x138] sm:$0xff] %v513
        %615 = vst [vmem:[%s164 + $0x140] sm:$0xff] %v517
        %616 = vst [vmem:[%s164 + $0x148] sm:$0xff] %v519
        %617 = vst [vmem:[%s164 + $0x150] sm:$0xff] %v521
        %618 = vst [vmem:[%s164 + $0x158] sm:$0xff] %v523
        %619 = vst [vmem:[%s164 + $0x160] sm:$0xff] %v527
        %620 = vst [vmem:[%s164 + $0x168] sm:$0xff] %v529
        %621 = vst [vmem:[%s164 + $0x170] sm:$0xff] %v531
        %622 = vst [vmem:[%s164 + $0x178] sm:$0xff] %v533
        %623 = vst [vmem:[%s164 + $0x180] sm:$0xff] %v537
        %624 = vst [vmem:[%s164 + $0x188] sm:$0xff] %v539
        %625 = vst [vmem:[%s164 + $0x190] sm:$0xff] %v541
        %626 = vst [vmem:[%s164 + $0x198] sm:$0xff] %v543
        %627 = vst [vmem:[%s164 + $0x1a0] sm:$0xff] %v547
        %628 = vst [vmem:[%s164 + $0x1a8] sm:$0xff] %v549
        %629 = vst [vmem:[%s164 + $0x1b0] sm:$0xff] %v551
        %630 = vst [vmem:[%s164 + $0x1b8] sm:$0xff] %v553
        %631 = vst [vmem:[%s164 + $0x1c0] sm:$0xff] %v557
        %632 = vst [vmem:[%s164 + $0x1c8] sm:$0xff] %v559
        %633 = vst [vmem:[%s164 + $0x1d0] sm:$0xff] %v561
        %634 = vst [vmem:[%s164 + $0x1d8] sm:$0xff] %v563
        %635 = vst [vmem:[%s164 + $0x1e0] sm:$0xff] %v567
        %636 = vst [vmem:[%s164 + $0x1e8] sm:$0xff] %v569
        %637 = vst [vmem:[%s164 + $0x1f0] sm:$0xff] %v571
        %638 = vst [vmem:[%s164 + $0x1f8] sm:$0xff] %v573
        %s639 = sand.u32 %s93, 1
        %s640 = scalar_lea.sflag [#allocation3], %s639
        %s641 = sand.u32 %s93, 1
        %s642 = smul.addr %s641, 512
        %s643 = scalar_lea.vmem [#allocation2], %s642
        // Predicated region
        $region33: #{tpu_custom_call.1} parent=31 // pred_check
          %p644 = pneg %p103
        $region34: #{tpu_custom_call.1} parent=31 // pred_check_branch
          %646 = sbr.rel (%p644) target = $region36
        $region35: #{tpu_custom_call.1} parent=31 // pred_region
          %s647 = smul.u32 32, %s17
          %s649 = ssub.s32 8192, 8192
          %650 = vsyncadd %s640, %s649
          %s651 = smul.addr %s647, 2
          %s652 = smul.addr %s651, 128
          %s653 = scalar_lea.hbm %s3, %s652
          %s654 = sshll.u32 %s643, 4
          %s655 = int_to_ptr.vmem [resolvable:$true] %s654
          %660 = dma.vmem_to_hbm [thread:$0]  %s655, 8192, %s653, %s640, 256, 256, 16
        $region36: #{tpu_custom_call.1} parent=31 // pred_fallthru
          _
      $region32: #{tpu_custom_call.1} parent=5 // pred_fallthru
        _
      %p661 = scmp.le.s32.totalorder 2, %s12
      // Predicated region
      $region37: #{tpu_custom_call.1} parent=5 // pred_check
        %p662 = pneg %p661
      $region38: #{tpu_custom_call.1} parent=5 // pred_check_branch
        %664 = sbr.rel (%p662) target = $region40
      $region39: #{tpu_custom_call.1} parent=5 // pred_region
        %s665 = ssub.s32 %s12, 2
        // Predicated region
        $region41: #{tpu_custom_call.1} parent=39 // pred_check
          %p666 = pneg %p109
        $region42: #{tpu_custom_call.1} parent=39 // pred_check_branch
          %668 = sbr.rel (%p666) target = $region44
        $region43: #{tpu_custom_call.1} parent=39 // pred_region
          %s669 = sand.u32 %s94, 1
          %s670 = scalar_lea.sflag [#allocation3], %s669
          %s671 = sand.u32 %s94, 1
          %s672 = smul.addr %s671, 512
          %s673 = scalar_lea.vmem [#allocation2], %s672
          %674 = dma.done %s670, 8192
        $region44: #{tpu_custom_call.1} parent=39 // pred_fallthru
          _
      $region40: #{tpu_custom_call.1} parent=5 // pred_fallthru
        _
    $region6: #{tpu_custom_call.1} parent=1 // loop_footer
      %s16 = sadd.s32 1, %s12
    $region7: #{tpu_custom_call.1} parent=1 // loop_footer_branch
      %11 = sbr.rel target = $region3
    $region8: #{tpu_custom_call.1} parent=1 // loop_exit
      _
    %675 = vsyncpa [#allocation3], 1
    %s676 = scalar_lea.sflag [#allocation3], 1
    %677 = vsyncpa %s676, 1

</llo_original>
